<compile_context>
chip_gen: v6e
topology: v6e:2x2x1
jax: 0.10.0
libtpu: 0.0.40
codegen_flags: <defaults>
</compile_context>

<pallas_src>
import functools

import jax
import jax.numpy as jnp
from jax.experimental import pallas as pl
from jax.experimental.pallas import tpu as pltpu


def _bn_kernel(x_ref, gamma_ref, beta_ref, o_ref, *, eps, inv_count):
    """x_ref/o_ref: (N, c_t, HW) f32.  gamma_ref/beta_ref: (c_t, 1) f32."""
    x = x_ref[...]

    # One-pass batch statistics per channel: lane (H*W) reduce, then batch (N).
    s = jnp.sum(x, axis=2, keepdims=True)            # (N, c_t, 1)
    ss = jnp.sum(x * x, axis=2, keepdims=True)       # (N, c_t, 1)
    s = jnp.sum(s, axis=0, keepdims=True)            # (1, c_t, 1)
    ss = jnp.sum(ss, axis=0, keepdims=True)          # (1, c_t, 1)

    mean = s * inv_count
    var = ss * inv_count - mean * mean               # biased var (training BN)
    inv_std = jax.lax.rsqrt(var + eps)

    # Folded affine: out = x * scale + bias (2 ops / element on the VPU).
    scale = gamma_ref[...] * inv_std                 # (1, c_t, 1)
    bias = beta_ref[...] - mean * scale              # (1, c_t, 1)
    o_ref[...] = x * scale + bias


def _pick_channel_tile(n, c, hw, itemsize, target_block_bytes=1 << 20):
    """Channel-block size: multiple of 8 (sublane), evenly divides C, and keeps
    the (N, c_t, H*W) x-block near `target_block_bytes` so double-buffered
    streaming fits comfortably in VMEM on v5e/v6e/v7x."""
    if c % 8 != 0:
        return c  # full-extent channel block is always legal
    divisors = [t for t in range(8, c + 1, 8) if c % t == 0]
    per_channel = max(1, n * hw * itemsize)
    fitting = [t for t in divisors if t * per_channel <= target_block_bytes]
    c_t = max(fitting) if fitting else divisors[0]
    # Prefer >= 2 channel blocks: enables DMA/compute pipelining and lets the
    # "parallel" grid axis shard across both v7x TensorCores.
    if c_t == c and len(divisors) > 1:
        c_t = divisors[-2]
    return c_t


def batchnorm2d_pallas(x_nchw, gamma, beta, eps=1e-5):
    """BatchNorm2d forward, training mode (batch stats), affine=True.

    x_nchw: (N, C, H, W) float32; gamma, beta: (C,) float32.
    Returns (N, C, H, W) float32.
    """
    n, c, h, w = x_nchw.shape
    hw = h * w

    # Free views -- no transposes, no extra HBM traffic.
    x3d = x_nchw.reshape(n, c, hw)
    gamma2d = gamma.reshape(c, 1).astype(x_nchw.dtype)
    beta2d = beta.reshape(c, 1).astype(x_nchw.dtype)

    itemsize = jnp.dtype(x_nchw.dtype).itemsize
    c_t = _pick_channel_tile(n, c, hw, itemsize)
    grid = (c // c_t,)
    inv_count = 1.0 / float(n * hw)

    # VMEM budget: in + out blocks, each double-buffered, plus headroom.
    block_bytes = n * c_t * hw * itemsize
    vmem_limit = int(min(max(4 * block_bytes + (4 << 20), 16 << 20), 48 << 20))

    out3d = pl.pallas_call(
        functools.partial(_bn_kernel, eps=float(eps), inv_count=inv_count),
        out_shape=jax.ShapeDtypeStruct((n, c, hw), x_nchw.dtype),
        grid=grid,
        in_specs=[
            pl.BlockSpec((n, c_t, hw), lambda i: (0, i, 0)),
            pl.BlockSpec((c_t, 1), lambda i: (i, 0)),
            pl.BlockSpec((c_t, 1), lambda i: (i, 0)),
        ],
        out_specs=pl.BlockSpec((n, c_t, hw), lambda i: (0, i, 0)),
        compiler_params=pltpu.CompilerParams(
            dimension_semantics=("parallel",),
            vmem_limit_bytes=vmem_limit,
        ),
    )(x3d, gamma2d, beta2d)

    return out3d.reshape(n, c, h, w)


def batchnorm2d_ref(x_nchw, gamma, beta, eps=1e-5):
    mean = jnp.mean(x_nchw, axis=(0, 2, 3), keepdims=True)
    var = jnp.mean((x_nchw - mean) ** 2, axis=(0, 2, 3), keepdims=True)
    g = gamma.reshape(1, -1, 1, 1)
    b = beta.reshape(1, -1, 1, 1)
    return (x_nchw - mean) * jax.lax.rsqrt(var + eps) * g + b


if __name__ == "__main__":
    # Small shapes consistent with the module: C must be 256 (BatchNorm2d(256)).
    N, C, H, W = 2, 256, 16, 16

    key = jax.random.PRNGKey(0)
    kx, kg, kb = jax.random.split(key, 3)
    x = jax.random.normal(kx, (N, C, H, W), dtype=jnp.float32)
    # Deterministic affine params (PyTorch default init is ones/zeros; random
    # values exercise the affine path).
    gamma = 1.0 + 0.1 * jax.random.normal(kg, (C,), dtype=jnp.float32)
    beta = 0.1 * jax.random.normal(kb, (C,), dtype=jnp.float32)

    out = batchnorm2d_pallas(x, gamma, beta)
    out = jax.block_until_ready(out)

    ref = batchnorm2d_ref(x, gamma, beta)
    assert out.shape == (N, C, H, W)
    # Slightly relaxed tolerance: kernel uses the one-pass E[x^2]-mean^2 form.
    assert jnp.allclose(out, ref, atol=2e-5, rtol=2e-5), "mismatch vs reference"

    print("KERNEL_OK")
</pallas_src>

<mosaic_0001>
module attributes {stable_mosaic.version = 11 : i64} {
  func.func @_bn_kernel(%arg0: i32, %arg1: memref<2x128x256xf32, #tpu.memory_space<vmem>>, %arg2: memref<128x1xf32, #tpu.memory_space<vmem>>, %arg3: memref<128x1xf32, #tpu.memory_space<vmem>>, %arg4: memref<2x128x256xf32, #tpu.memory_space<vmem>>) attributes {dimension_semantics = [#tpu.dimension_semantics<parallel>], iteration_bounds = array<i64: 2>, scalar_prefetch = 0 : i64, scratch_operands = 0 : i64, tpu.core_type = #tpu.core_type<tc>, window_params = [{transform_indices = @transform_0, window_bounds = array<i64: 2, 128, 256>}, {transform_indices = @transform_1, window_bounds = array<i64: 128, 1>}, {transform_indices = @transform_2, window_bounds = array<i64: 128, 1>}, {transform_indices = @transform_3, window_bounds = array<i64: 2, 128, 256>}]} {
    %c0 = arith.constant 0 : index
    %c0_0 = arith.constant 0 : index
    %c0_1 = arith.constant 0 : index
    %0 = vector.load %arg1[%c0, %c0_0, %c0_1] : memref<2x128x256xf32, #tpu.memory_space<vmem>>, vector<2x128x256xf32>
    %cst = arith.constant dense<0.000000e+00> : vector<2x128xf32>
    %1 = vector.multi_reduction <add>, %0, %cst [2] : vector<2x128x256xf32> to vector<2x128xf32>
    %2 = vector.shape_cast %1 : vector<2x128xf32> to vector<2x128x1xf32>
    %3 = arith.mulf %0, %0 : vector<2x128x256xf32>
    %cst_2 = arith.constant dense<0.000000e+00> : vector<2x128xf32>
    %4 = vector.multi_reduction <add>, %3, %cst_2 [2] : vector<2x128x256xf32> to vector<2x128xf32>
    %5 = vector.shape_cast %4 : vector<2x128xf32> to vector<2x128x1xf32>
    %cst_3 = arith.constant dense<0.000000e+00> : vector<128x1xf32>
    %6 = vector.multi_reduction <add>, %2, %cst_3 [0] : vector<2x128x1xf32> to vector<128x1xf32>
    %7 = vector.shape_cast %6 : vector<128x1xf32> to vector<1x128x1xf32>
    %cst_4 = arith.constant dense<0.000000e+00> : vector<128x1xf32>
    %8 = vector.multi_reduction <add>, %5, %cst_4 [0] : vector<2x128x1xf32> to vector<128x1xf32>
    %9 = vector.shape_cast %8 : vector<128x1xf32> to vector<1x128x1xf32>
    %cst_5 = arith.constant 0.001953125 : f32
    %10 = vector.broadcast %cst_5 : f32 to vector<1x128x1xf32>
    %11 = arith.mulf %7, %10 : vector<1x128x1xf32>
    %cst_6 = arith.constant 0.001953125 : f32
    %12 = vector.broadcast %cst_6 : f32 to vector<1x128x1xf32>
    %13 = arith.mulf %9, %12 : vector<1x128x1xf32>
    %14 = arith.mulf %11, %11 : vector<1x128x1xf32>
    %15 = arith.subf %13, %14 : vector<1x128x1xf32>
    %cst_7 = arith.constant 9.99999974E-6 : f32
    %16 = vector.broadcast %cst_7 : f32 to vector<1x128x1xf32>
    %17 = arith.addf %15, %16 : vector<1x128x1xf32>
    %18 = math.rsqrt %17 : vector<1x128x1xf32>
    %c0_8 = arith.constant 0 : index
    %c0_9 = arith.constant 0 : index
    %19 = vector.load %arg2[%c0_8, %c0_9] : memref<128x1xf32, #tpu.memory_space<vmem>>, vector<128x1xf32>
    %20 = vector.shape_cast %19 : vector<128x1xf32> to vector<1x128x1xf32>
    %21 = arith.mulf %20, %18 : vector<1x128x1xf32>
    %c0_10 = arith.constant 0 : index
    %c0_11 = arith.constant 0 : index
    %22 = vector.load %arg3[%c0_10, %c0_11] : memref<128x1xf32, #tpu.memory_space<vmem>>, vector<128x1xf32>
    %23 = arith.mulf %11, %21 : vector<1x128x1xf32>
    %24 = vector.shape_cast %22 : vector<128x1xf32> to vector<1x128x1xf32>
    %25 = arith.subf %24, %23 : vector<1x128x1xf32>
    %26 = vector.broadcast %21 : vector<1x128x1xf32> to vector<2x128x256xf32>
    %27 = arith.mulf %0, %26 : vector<2x128x256xf32>
    %28 = vector.broadcast %25 : vector<1x128x1xf32> to vector<2x128x256xf32>
    %29 = arith.addf %27, %28 : vector<2x128x256xf32>
    %c0_12 = arith.constant 0 : index
    %c0_13 = arith.constant 0 : index
    %c0_14 = arith.constant 0 : index
    %30 = vector.load %arg4[%c0_12, %c0_13, %c0_14] : memref<2x128x256xf32, #tpu.memory_space<vmem>>, vector<2x128x256xf32>
    tpu.vector_store %arg4[%c0_12, %c0_13, %c0_14], %29 {strides = array<i32>} : memref<2x128x256xf32, #tpu.memory_space<vmem>>, vector<2x128x256xf32>,
    return
  }
  func.func @transform_0(%arg0: i32) -> (i32, i32, i32) {
    %c0_i32 = arith.constant 0 : i32
    %c0_i32_0 = arith.constant 0 : i32
    %c0_i32_1 = arith.constant 0 : i32
    return %c0_i32, %arg0, %c0_i32_0 : i32, i32, i32
  }
  func.func @transform_1(%arg0: i32) -> (i32, i32) {
    %c0_i32 = arith.constant 0 : i32
    %c0_i32_0 = arith.constant 0 : i32
    return %arg0, %c0_i32 : i32, i32
  }
  func.func @transform_2(%arg0: i32) -> (i32, i32) {
    %c0_i32 = arith.constant 0 : i32
    %c0_i32_0 = arith.constant 0 : i32
    return %arg0, %c0_i32 : i32, i32
  }
  func.func @transform_3(%arg0: i32) -> (i32, i32, i32) {
    %c0_i32 = arith.constant 0 : i32
    %c0_i32_0 = arith.constant 0 : i32
    %c0_i32_1 = arith.constant 0 : i32
    return %c0_i32, %arg0, %c0_i32_0 : i32, i32, i32
  }
}

</mosaic_0001>

<llo_original>
// kernel: tpu_custom_call.1
$region0: #{tpu_custom_call.1}
  #allocation0 [shape = 'u32[]', space=smem, size = 0x4, offset = 0x4, fixed_abs, tag = 'smem constant byte address 0x4 - core index']
  #allocation1 [shape = 'u32[144,128]{1,0:T(1,128)}', space=vmem, size = 0x12000, scoped, tag = 'internal scratch']
  #allocation6 [shape = 's32[]', space=sflag, size = 0x4, offset = 0, fixed_abs, tag = 'sflag constant byte address 0x0 - dummy sync flag']
  #allocation8 [shape = 's32[]', space=sflag, size = 0x4, offset = 0, fixed_abs, tag = 'sflag constant byte address 0x0 - dummy sync flag']
  %s0 = inlined_call_operand.hbm [shape: f32[2,256,256], index: 0, kind: input, shape index: {}]
  %s1 = inlined_call_operand.vmem [shape: f32[256,1], index: 1, kind: input, shape index: {}]
  %s2 = inlined_call_operand.vmem [shape: f32[256,1], index: 2, kind: input, shape index: {}]
  %s3 = inlined_call_operand.hbm [shape: f32[2,256,256], index: 3, kind: output, shape index: {}]
  %s4 = sld [smem:[#allocation0]]
  $region49: #{tpu_custom_call.1} parent=0
    _
  %s6 = ssub.s32 1, %s4
  %s7 = scalar_select 0, %s6, %s4
  $region1: #{tpu_custom_call.1} parent=0
    #allocation2 [shape = 'u8[524288]{0}', space=vmem, size = 0x80000, scoped, tag = 'input window, operand 0']
    #allocation3 [shape = 's32[2]{0}', space=sflag, size = 0x8, scoped, tag = 'scoped memory for tpu_custom_call.1']
    #allocation4 [shape = 's32[2]{0}', space=sflag, size = 0x8, scoped, tag = 'scoped memory for tpu_custom_call.1']
    #allocation5 [shape = 'u8[524288]{0}', space=vmem, size = 0x80000, scoped, tag = 'output window, operand 0']
    %8 = vsyncpa [#allocation3], 0
    %s9 = scalar_lea.sflag [#allocation3], 1
    %10 = vsyncpa %s9, 0
    %11 = vsyncpa [#allocation4], 0
    %s12 = scalar_lea.sflag [#allocation4], 1
    %13 = vsyncpa %s12, 0
    loop: start=0, step=1, limit=4
    $region2: #{tpu_custom_call.1} parent=1 // loop_pre_header
      _
    $region3: #{tpu_custom_call.1} parent=1 // loop_header
      %s15 = sphi 0, %s19
      %p16 = scmp.ge.s32.totalorder %s15, 4
      %s25 = sphi 0, %s27
      %s28 = sphi 0, %s25
      %s29 = sphi 0, %s28
      %s45 = sphi 0, %s29
      %s51 = sphi 0, %s53
      %s54 = sphi 0, %s51
      %s55 = sphi 0, %s54
      %s71 = sphi 0, %s55
      %s77 = sphi 0, %s79
      %s80 = sphi 0, %s77
      %s81 = sphi 0, %s80
      %s97 = sphi 0, %s81
      %s103 = sphi 0, %s105
      %s106 = sphi 0, %s103
      %s107 = sphi 0, %s106
      %s123 = sphi 0, %s107
    $region4: #{tpu_custom_call.1} parent=1 // loop_header_branch
      %18 = sbr.rel (%p16) target = $region8
    $region5: #{tpu_custom_call.1} parent=1 // loop_body
      %s20 = ssub.s32 %s15, 1
      %s21 = ssub.s32 %s15, 2
      %s22 = sadd.s32 %s15, 1
      %s23 = ssub.s32 %s15, %s22
      %p24 = scmp.eq.s32.totalorder %s23, 0
      %s26 = sadd.s32 %s25, 1
      %s27 = scalar_select %p24, %s25, %s26
      %p30 = pneg %p24
      %p31 = scmp.eq.s32.totalorder %s15, 1
      %p32 = por %p30, %p31
      %p33 = scmp.ne.s32.totalorder %s25, %s28
      %p34 = scmp.eq.s32.totalorder %s15, 0
      %p35 = por %p33, %p34
      %p36 = scmp.ne.s32.totalorder %s25, %s28
      %p37 = scmp.eq.s32.totalorder %s20, 1
      %p38 = por %p36, %p37
      %p39 = scmp.ne.s32.totalorder %s28, %s29
      %p40 = scmp.eq.s32.totalorder %s20, 0
      %p41 = por %p39, %p40
      %p42 = scmp.ne.s32.totalorder %s28, %s29
      %p43 = scmp.eq.s32.totalorder %s21, 1
      %p44 = por %p42, %p43
      %p46 = scmp.ne.s32.totalorder %s29, %s45
      %p47 = scmp.eq.s32.totalorder %s21, 0
      %p48 = por %p46, %p47
      %s49 = ssub.s32 %s15, %s22
      %p50 = scmp.eq.s32.totalorder %s49, 0
      %s52 = sadd.s32 %s51, 1
      %s53 = scalar_select %p50, %s51, %s52
      %p56 = pneg %p50
      %p57 = scmp.eq.s32.totalorder %s15, 1
      %p58 = por %p56, %p57
      %p59 = scmp.ne.s32.totalorder %s51, %s54
      %p60 = scmp.eq.s32.totalorder %s15, 0
      %p61 = por %p59, %p60
      %p62 = scmp.ne.s32.totalorder %s51, %s54
      %p63 = scmp.eq.s32.totalorder %s20, 1
      %p64 = por %p62, %p63
      %p65 = scmp.ne.s32.totalorder %s54, %s55
      %p66 = scmp.eq.s32.totalorder %s20, 0
      %p67 = por %p65, %p66
      %p68 = scmp.ne.s32.totalorder %s54, %s55
      %p69 = scmp.eq.s32.totalorder %s21, 1
      %p70 = por %p68, %p69
      %p72 = scmp.ne.s32.totalorder %s55, %s71
      %p73 = scmp.eq.s32.totalorder %s21, 0
      %p74 = por %p72, %p73
      %s75 = ssub.s32 %s15, %s22
      %p76 = scmp.eq.s32.totalorder %s75, 0
      %s78 = sadd.s32 %s77, 1
      %s79 = scalar_select %p76, %s77, %s78
      %p82 = pneg %p76
      %p83 = scmp.eq.s32.totalorder %s15, 1
      %p84 = por %p82, %p83
      %p85 = scmp.ne.s32.totalorder %s77, %s80
      %p86 = scmp.eq.s32.totalorder %s15, 0
      %p87 = por %p85, %p86
      %p88 = scmp.ne.s32.totalorder %s77, %s80
      %p89 = scmp.eq.s32.totalorder %s20, 1
      %p90 = por %p88, %p89
      %p91 = scmp.ne.s32.totalorder %s80, %s81
      %p92 = scmp.eq.s32.totalorder %s20, 0
      %p93 = por %p91, %p92
      %p94 = scmp.ne.s32.totalorder %s80, %s81
      %p95 = scmp.eq.s32.totalorder %s21, 1
      %p96 = por %p94, %p95
      %p98 = scmp.ne.s32.totalorder %s81, %s97
      %p99 = scmp.eq.s32.totalorder %s21, 0
      %p100 = por %p98, %p99
      %s101 = ssub.s32 %s15, %s22
      %p102 = scmp.eq.s32.totalorder %s101, 0
      %s104 = sadd.s32 %s103, 1
      %s105 = scalar_select %p102, %s103, %s104
      %p108 = pneg %p102
      %p109 = scmp.eq.s32.totalorder %s15, 1
      %p110 = por %p108, %p109
      %p111 = scmp.ne.s32.totalorder %s103, %s106
      %p112 = scmp.eq.s32.totalorder %s15, 0
      %p113 = por %p111, %p112
      %p114 = scmp.ne.s32.totalorder %s103, %s106
      %p115 = scmp.eq.s32.totalorder %s20, 1
      %p116 = por %p114, %p115
      %p117 = scmp.ne.s32.totalorder %s106, %s107
      %p118 = scmp.eq.s32.totalorder %s20, 0
      %p119 = por %p117, %p118
      %p120 = scmp.ne.s32.totalorder %s106, %s107
      %p121 = scmp.eq.s32.totalorder %s21, 1
      %p122 = por %p120, %p121
      %p124 = scmp.ne.s32.totalorder %s107, %s123
      %p125 = scmp.eq.s32.totalorder %s21, 0
      %p126 = por %p124, %p125
      %p127 = scmp.le.s32.totalorder 1, %s15
      %p128 = scmp.lt.s32.totalorder %s15, 3
      %p129 = pnand %p127, %p128
      %p130 = pneg %p129
      // Predicated region
      $region9: #{tpu_custom_call.1} parent=5 // pred_check
        _
      $region10: #{tpu_custom_call.1} parent=5 // pred_check_branch
        %132 = sbr.rel (%p129) target = $region12
      $region11: #{tpu_custom_call.1} parent=5 // pred_region
        %s133 = ssub.s32 %s15, 1
      $region12: #{tpu_custom_call.1} parent=5 // pred_fallthru
        _
      %p134 = scmp.lt.s32.totalorder %s15, 2
      // Predicated region
      $region13: #{tpu_custom_call.1} parent=5 // pred_check
        %p135 = pneg %p134
      $region14: #{tpu_custom_call.1} parent=5 // pred_check_branch
        %137 = sbr.rel (%p135) target = $region16
      $region15: #{tpu_custom_call.1} parent=5 // pred_region
        // Predicated region
        $region17: #{tpu_custom_call.1} parent=15 // pred_check
          %p138 = pneg %p35
        $region18: #{tpu_custom_call.1} parent=15 // pred_check_branch
          %140 = sbr.rel (%p138) target = $region20
        $region19: #{tpu_custom_call.1} parent=15 // pred_region
          #allocation7 [shape = 'u32[6]{0}', space=smem, size = 0x18, scoped, tag = 'DMA stride descriptor']
          %s141 = sand.u32 %s25, 1
          %s142 = scalar_lea.sflag [#allocation3], %s141
          %s143 = sand.u32 %s25, 1
          %s144 = smul.addr %s143, 512
          %s145 = scalar_lea.vmem [#allocation2], %s144
          %s146 = smul.u32 16, %s15
          %s148 = ssub.s32 8192, 8192
          %149 = vsyncadd %s142, %s148
          %s150 = smul.addr %s146, 2
          %s151 = smul.addr %s150, 128
          %s152 = scalar_lea.hbm %s0, %s151
          %s154 = sshll.u32 1, 14
          %s155 = sxor.u32 4294967295, %s154
          %s157 = sld [smem:[#allocation0]]
          %s158 = sadd.s32 2, %s157
          %s160 = sshll.u32 7, 26
          %s161 = sxor.u32 4294967295, %s160
          %s162 = sand.u32 0, %s161
          %s163 = sshll.u32 %s158, 26
          %s164 = sor.u32 %s162, %s163
          %s165 = sshll.u32 %s145, 4
          %s166 = int_to_ptr.vmem [resolvable:$true] %s165
          %172 = sst [smem:[#allocation7]] 8192
          %s173 = scalar_lea.smem [#allocation7], 1
          %174 = sst [smem:[%s173]] 4096
          %s175 = scalar_lea.smem [#allocation7], 2
          %176 = sst [smem:[%s175]] 16
          %s177 = scalar_lea.smem [#allocation7], 3
          %178 = sst [smem:[%s177]] 256
          %s179 = scalar_lea.smem [#allocation7], 4
          %180 = sst [smem:[%s179]] 256
          %s181 = scalar_lea.smem [#allocation7], 5
          %182 = sst [smem:[%s181]] 16
          %184 = dma.general %s152, 8192, %s166, %s142, 131072, [#allocation7], %s164, 0
        $region20: #{tpu_custom_call.1} parent=15 // pred_fallthru
          _
        // Predicated region
        $region21: #{tpu_custom_call.1} parent=15 // pred_check
          %p185 = pneg %p61
        $region22: #{tpu_custom_call.1} parent=15 // pred_check_branch
          %187 = sbr.rel (%p185) target = $region24
        $region23: #{tpu_custom_call.1} parent=15 // pred_region
          %s188 = smul.u32 16, %s15
          %p189 = scmp.lt.s32.totalorder %s188, 31
          %s190 = scalar_select %p189, %s188, 31
          %s191 = smul.addr %s190, 8
          %s192 = scalar_lea.vmem %s1, %s191
          %s193 = smul.u32 16, %s15
        $region24: #{tpu_custom_call.1} parent=15 // pred_fallthru
          _
        // Predicated region
        $region25: #{tpu_custom_call.1} parent=15 // pred_check
          %p194 = pneg %p87
        $region26: #{tpu_custom_call.1} parent=15 // pred_check_branch
          %196 = sbr.rel (%p194) target = $region28
        $region27: #{tpu_custom_call.1} parent=15 // pred_region
          %s197 = smul.u32 16, %s15
          %p198 = scmp.lt.s32.totalorder %s197, 31
          %s199 = scalar_select %p198, %s197, 31
          %s200 = smul.addr %s199, 8
          %s201 = scalar_lea.vmem %s2, %s200
          %s202 = smul.u32 16, %s15
        $region28: #{tpu_custom_call.1} parent=15 // pred_fallthru
          _
      $region16: #{tpu_custom_call.1} parent=5 // pred_fallthru
        _
      %p203 = scmp.le.s32.totalorder 1, %s15
      %p204 = scmp.lt.s32.totalorder %s15, 3
      %p205 = pnand %p203, %p204
      %p206 = pneg %p205
      // Predicated region
      $region29: #{tpu_custom_call.1} parent=5 // pred_check
        _
      $region30: #{tpu_custom_call.1} parent=5 // pred_check_branch
        %208 = sbr.rel (%p205) target = $region32
      $region31: #{tpu_custom_call.1} parent=5 // pred_region
        %s209 = ssub.s32 %s15, 1
        %s210 = sand.u32 %s28, 1
        %s211 = scalar_lea.sflag [#allocation3], %s210
        %s212 = sand.u32 %s28, 1
        %s213 = smul.addr %s212, 512
        %s214 = scalar_lea.vmem [#allocation2], %s213
        // Predicated region
        $region33: #{tpu_custom_call.1} parent=31 // pred_check
          %p215 = pneg %p41
        $region34: #{tpu_custom_call.1} parent=31 // pred_check_branch
          %217 = sbr.rel (%p215) target = $region36
        $region35: #{tpu_custom_call.1} parent=31 // pred_region
          %218 = dma.done %s211, 8192
        $region36: #{tpu_custom_call.1} parent=31 // pred_fallthru
          _
        %s219 = sand.u32 %s28, 1
        %s220 = scalar_lea.sflag [#allocation3], %s219
        %s221 = sand.u32 %s28, 1
        %s222 = smul.addr %s221, 512
        %s223 = scalar_lea.vmem [#allocation2], %s222
        %p224 = pneg %p41
        %p225 = pneg %p38
        %s226 = smul.u32 16, %s20
        %p227 = scmp.lt.s32.totalorder %s226, 31
        %s228 = scalar_select %p227, %s226, 31
        %s229 = smul.addr %s228, 8
        %s230 = scalar_lea.vmem %s1, %s229
        %p231 = pneg %p67
        %p232 = pneg %p64
        %s233 = smul.u32 16, %s20
        %p234 = scmp.lt.s32.totalorder %s233, 31
        %s235 = scalar_select %p234, %s233, 31
        %s236 = smul.addr %s235, 8
        %s237 = scalar_lea.vmem %s2, %s236
        %p238 = pneg %p93
        %p239 = pneg %p90
        %p240 = pneg %p119
        %p241 = pneg %p116
        %s242 = sand.u32 %s106, 1
        %s243 = scalar_lea.sflag [#allocation4], %s242
        %s244 = sand.u32 %s106, 1
        %s245 = smul.addr %s244, 512
        %s246 = scalar_lea.vmem [#allocation5], %s245
        %s247 = smul.u32 16, %s20
        %s248 = smul.u32 16, %s20
        %p249 = scmp.lt.s32.totalorder %s248, 31
        %s250 = scalar_select %p249, %s248, 31
        %s251 = smul.addr %s250, 8
        %s252 = scalar_lea.vmem %s1, %s251
        %s253 = smul.u32 16, %s20
        %s254 = smul.u32 16, %s20
        %p255 = scmp.lt.s32.totalorder %s254, 31
        %s256 = scalar_select %p255, %s254, 31
        %s257 = smul.addr %s256, 8
        %s258 = scalar_lea.vmem %s2, %s257
        %s259 = smul.u32 16, %s20
        %s260 = smul.u32 16, %s20
        %v261 = vld [vmem:[%s214] sm:$0xff]
        %v262 = vld [vmem:[%s214 + $0x8] sm:$0xff]
        %v263 = vld [vmem:[%s214 + $0x10] sm:$0xff]
        %v264 = vld [vmem:[%s214 + $0x18] sm:$0xff]
        %v265 = vld [vmem:[%s214 + $0x20] sm:$0xff]
        %v266 = vld [vmem:[%s214 + $0x28] sm:$0xff]
        %v267 = vld [vmem:[%s214 + $0x30] sm:$0xff]
        %v268 = vld [vmem:[%s214 + $0x38] sm:$0xff]
        %v269 = vld [vmem:[%s214 + $0x40] sm:$0xff]
        %v270 = vld [vmem:[%s214 + $0x48] sm:$0xff]
        %v271 = vld [vmem:[%s214 + $0x50] sm:$0xff]
        %v272 = vld [vmem:[%s214 + $0x58] sm:$0xff]
        %v273 = vld [vmem:[%s214 + $0x60] sm:$0xff]
        %v274 = vld [vmem:[%s214 + $0x68] sm:$0xff]
        %v275 = vld [vmem:[%s214 + $0x70] sm:$0xff]
        %v276 = vld [vmem:[%s214 + $0x78] sm:$0xff]
        %v277 = vld [vmem:[%s214 + $0x80] sm:$0xff]
        %v278 = vld [vmem:[%s214 + $0x88] sm:$0xff]
        %v279 = vld [vmem:[%s214 + $0x90] sm:$0xff]
        %v280 = vld [vmem:[%s214 + $0x98] sm:$0xff]
        %v281 = vld [vmem:[%s214 + $0xa0] sm:$0xff]
        %v282 = vld [vmem:[%s214 + $0xa8] sm:$0xff]
        %v283 = vld [vmem:[%s214 + $0xb0] sm:$0xff]
        %v284 = vld [vmem:[%s214 + $0xb8] sm:$0xff]
        %v285 = vld [vmem:[%s214 + $0xc0] sm:$0xff]
        %v286 = vld [vmem:[%s214 + $0xc8] sm:$0xff]
        %v287 = vld [vmem:[%s214 + $0xd0] sm:$0xff]
        %v288 = vld [vmem:[%s214 + $0xd8] sm:$0xff]
        %v289 = vld [vmem:[%s214 + $0xe0] sm:$0xff]
        %v290 = vld [vmem:[%s214 + $0xe8] sm:$0xff]
        %v291 = vld [vmem:[%s214 + $0xf0] sm:$0xff]
        %v292 = vld [vmem:[%s214 + $0xf8] sm:$0xff]
        %v293 = vld [vmem:[%s214 + $0x100] sm:$0xff]
        %v294 = vld [vmem:[%s214 + $0x108] sm:$0xff]
        %v295 = vld [vmem:[%s214 + $0x110] sm:$0xff]
        %v296 = vld [vmem:[%s214 + $0x118] sm:$0xff]
        %v297 = vld [vmem:[%s214 + $0x120] sm:$0xff]
        %v298 = vld [vmem:[%s214 + $0x128] sm:$0xff]
        %v299 = vld [vmem:[%s214 + $0x130] sm:$0xff]
        %v300 = vld [vmem:[%s214 + $0x138] sm:$0xff]
        %v301 = vld [vmem:[%s214 + $0x140] sm:$0xff]
        %v302 = vld [vmem:[%s214 + $0x148] sm:$0xff]
        %v303 = vld [vmem:[%s214 + $0x150] sm:$0xff]
        %v304 = vld [vmem:[%s214 + $0x158] sm:$0xff]
        %v305 = vld [vmem:[%s214 + $0x160] sm:$0xff]
        %v306 = vld [vmem:[%s214 + $0x168] sm:$0xff]
        %v307 = vld [vmem:[%s214 + $0x170] sm:$0xff]
        %v308 = vld [vmem:[%s214 + $0x178] sm:$0xff]
        %v309 = vld [vmem:[%s214 + $0x180] sm:$0xff]
        %v310 = vld [vmem:[%s214 + $0x188] sm:$0xff]
        %v311 = vld [vmem:[%s214 + $0x190] sm:$0xff]
        %v312 = vld [vmem:[%s214 + $0x198] sm:$0xff]
        %v313 = vld [vmem:[%s214 + $0x1a0] sm:$0xff]
        %v314 = vld [vmem:[%s214 + $0x1a8] sm:$0xff]
        %v315 = vld [vmem:[%s214 + $0x1b0] sm:$0xff]
        %v316 = vld [vmem:[%s214 + $0x1b8] sm:$0xff]
        %v317 = vld [vmem:[%s214 + $0x1c0] sm:$0xff]
        %v318 = vld [vmem:[%s214 + $0x1c8] sm:$0xff]
        %v319 = vld [vmem:[%s214 + $0x1d0] sm:$0xff]
        %v320 = vld [vmem:[%s214 + $0x1d8] sm:$0xff]
        %v321 = vld [vmem:[%s214 + $0x1e0] sm:$0xff]
        %v322 = vld [vmem:[%s214 + $0x1e8] sm:$0xff]
        %v323 = vld [vmem:[%s214 + $0x1f0] sm:$0xff]
        %v324 = vld [vmem:[%s214 + $0x1f8] sm:$0xff]
        %v325 = vadd.f32 %v261, %v262
        %326 = vadd.xlane.f32.xlu0 %v325
        %v327 = vpop.xlane.xlu0 %326
        %v328 = vadd.f32 %v263, %v264
        %329 = vadd.xlane.f32.xlu0 %v328
        %v330 = vpop.xlane.xlu0 %329
        %v331 = vadd.f32 %v265, %v266
        %332 = vadd.xlane.f32.xlu0 %v331
        %v333 = vpop.xlane.xlu0 %332
        %v334 = vadd.f32 %v267, %v268
        %335 = vadd.xlane.f32.xlu0 %v334
        %v336 = vpop.xlane.xlu0 %335
        %v337 = vadd.f32 %v269, %v270
        %338 = vadd.xlane.f32.xlu0 %v337
        %v339 = vpop.xlane.xlu0 %338
        %v340 = vadd.f32 %v271, %v272
        %341 = vadd.xlane.f32.xlu0 %v340
        %v342 = vpop.xlane.xlu0 %341
        %v343 = vadd.f32 %v273, %v274
        %344 = vadd.xlane.f32.xlu0 %v343
        %v345 = vpop.xlane.xlu0 %344
        %v346 = vadd.f32 %v275, %v276
        %347 = vadd.xlane.f32.xlu0 %v346
        %v348 = vpop.xlane.xlu0 %347
        %v349 = vadd.f32 %v277, %v278
        %350 = vadd.xlane.f32.xlu0 %v349
        %v351 = vpop.xlane.xlu0 %350
        %v352 = vadd.f32 %v279, %v280
        %353 = vadd.xlane.f32.xlu0 %v352
        %v354 = vpop.xlane.xlu0 %353
        %v355 = vadd.f32 %v281, %v282
        %356 = vadd.xlane.f32.xlu0 %v355
        %v357 = vpop.xlane.xlu0 %356
        %v358 = vadd.f32 %v283, %v284
        %359 = vadd.xlane.f32.xlu0 %v358
        %v360 = vpop.xlane.xlu0 %359
        %v361 = vadd.f32 %v285, %v286
        %362 = vadd.xlane.f32.xlu0 %v361
        %v363 = vpop.xlane.xlu0 %362
        %v364 = vadd.f32 %v287, %v288
        %365 = vadd.xlane.f32.xlu0 %v364
        %v366 = vpop.xlane.xlu0 %365
        %v367 = vadd.f32 %v289, %v290
        %368 = vadd.xlane.f32.xlu0 %v367
        %v369 = vpop.xlane.xlu0 %368
        %v370 = vadd.f32 %v291, %v292
        %371 = vadd.xlane.f32.xlu0 %v370
        %v372 = vpop.xlane.xlu0 %371
        %v373 = vadd.f32 %v293, %v294
        %374 = vadd.xlane.f32.xlu0 %v373
        %v375 = vpop.xlane.xlu0 %374
        %v376 = vadd.f32 %v295, %v296
        %377 = vadd.xlane.f32.xlu0 %v376
        %v378 = vpop.xlane.xlu0 %377
        %v379 = vadd.f32 %v297, %v298
        %380 = vadd.xlane.f32.xlu0 %v379
        %v381 = vpop.xlane.xlu0 %380
        %v382 = vadd.f32 %v299, %v300
        %383 = vadd.xlane.f32.xlu0 %v382
        %v384 = vpop.xlane.xlu0 %383
        %v385 = vadd.f32 %v301, %v302
        %386 = vadd.xlane.f32.xlu0 %v385
        %v387 = vpop.xlane.xlu0 %386
        %v388 = vadd.f32 %v303, %v304
        %389 = vadd.xlane.f32.xlu0 %v388
        %v390 = vpop.xlane.xlu0 %389
        %v391 = vadd.f32 %v305, %v306
        %392 = vadd.xlane.f32.xlu0 %v391
        %v393 = vpop.xlane.xlu0 %392
        %v394 = vadd.f32 %v307, %v308
        %395 = vadd.xlane.f32.xlu0 %v394
        %v396 = vpop.xlane.xlu0 %395
        %v397 = vadd.f32 %v309, %v310
        %398 = vadd.xlane.f32.xlu0 %v397
        %v399 = vpop.xlane.xlu0 %398
        %v400 = vadd.f32 %v311, %v312
        %401 = vadd.xlane.f32.xlu0 %v400
        %v402 = vpop.xlane.xlu0 %401
        %v403 = vadd.f32 %v313, %v314
        %404 = vadd.xlane.f32.xlu0 %v403
        %v405 = vpop.xlane.xlu0 %404
        %v406 = vadd.f32 %v315, %v316
        %407 = vadd.xlane.f32.xlu0 %v406
        %v408 = vpop.xlane.xlu0 %407
        %v409 = vadd.f32 %v317, %v318
        %410 = vadd.xlane.f32.xlu0 %v409
        %v411 = vpop.xlane.xlu0 %410
        %v412 = vadd.f32 %v319, %v320
        %413 = vadd.xlane.f32.xlu0 %v412
        %v414 = vpop.xlane.xlu0 %413
        %v415 = vadd.f32 %v321, %v322
        %416 = vadd.xlane.f32.xlu0 %v415
        %v417 = vpop.xlane.xlu0 %416
        %v418 = vadd.f32 %v323, %v324
        %419 = vadd.xlane.f32.xlu0 %v418
        %v420 = vpop.xlane.xlu0 %419
        %v421 = vmul.f32 %v261, %v261
        %v422 = vmul.f32 %v262, %v262
        %v423 = vmul.f32 %v263, %v263
        %v424 = vmul.f32 %v264, %v264
        %v425 = vmul.f32 %v265, %v265
        %v426 = vmul.f32 %v266, %v266
        %v427 = vmul.f32 %v267, %v267
        %v428 = vmul.f32 %v268, %v268
        %v429 = vmul.f32 %v269, %v269
        %v430 = vmul.f32 %v270, %v270
        %v431 = vmul.f32 %v271, %v271
        %v432 = vmul.f32 %v272, %v272
        %v433 = vmul.f32 %v273, %v273
        %v434 = vmul.f32 %v274, %v274
        %v435 = vmul.f32 %v275, %v275
        %v436 = vmul.f32 %v276, %v276
        %v437 = vmul.f32 %v277, %v277
        %v438 = vmul.f32 %v278, %v278
        %v439 = vmul.f32 %v279, %v279
        %v440 = vmul.f32 %v280, %v280
        %v441 = vmul.f32 %v281, %v281
        %v442 = vmul.f32 %v282, %v282
        %v443 = vmul.f32 %v283, %v283
        %v444 = vmul.f32 %v284, %v284
        %v445 = vmul.f32 %v285, %v285
        %v446 = vmul.f32 %v286, %v286
        %v447 = vmul.f32 %v287, %v287
        %v448 = vmul.f32 %v288, %v288
        %v449 = vmul.f32 %v289, %v289
        %v450 = vmul.f32 %v290, %v290
        %v451 = vmul.f32 %v291, %v291
        %v452 = vmul.f32 %v292, %v292
        %v453 = vmul.f32 %v293, %v293
        %v454 = vmul.f32 %v294, %v294
        %v455 = vmul.f32 %v295, %v295
        %v456 = vmul.f32 %v296, %v296
        %v457 = vmul.f32 %v297, %v297
        %v458 = vmul.f32 %v298, %v298
        %v459 = vmul.f32 %v299, %v299
        %v460 = vmul.f32 %v300, %v300
        %v461 = vmul.f32 %v301, %v301
        %v462 = vmul.f32 %v302, %v302
        %v463 = vmul.f32 %v303, %v303
        %v464 = vmul.f32 %v304, %v304
        %v465 = vmul.f32 %v305, %v305
        %v466 = vmul.f32 %v306, %v306
        %v467 = vmul.f32 %v307, %v307
        %v468 = vmul.f32 %v308, %v308
        %v469 = vmul.f32 %v309, %v309
        %v470 = vmul.f32 %v310, %v310
        %v471 = vmul.f32 %v311, %v311
        %v472 = vmul.f32 %v312, %v312
        %v473 = vmul.f32 %v313, %v313
        %v474 = vmul.f32 %v314, %v314
        %v475 = vmul.f32 %v315, %v315
        %v476 = vmul.f32 %v316, %v316
        %v477 = vmul.f32 %v317, %v317
        %v478 = vmul.f32 %v318, %v318
        %v479 = vmul.f32 %v319, %v319
        %v480 = vmul.f32 %v320, %v320
        %v481 = vmul.f32 %v321, %v321
        %v482 = vmul.f32 %v322, %v322
        %v483 = vmul.f32 %v323, %v323
        %v484 = vmul.f32 %v324, %v324
        %v485 = vadd.f32 %v421, %v422
        %486 = vadd.xlane.f32.xlu0 %v485
        %v487 = vpop.xlane.xlu0 %486
        %v488 = vadd.f32 %v423, %v424
        %489 = vadd.xlane.f32.xlu0 %v488
        %v490 = vpop.xlane.xlu0 %489
        %v491 = vadd.f32 %v425, %v426
        %492 = vadd.xlane.f32.xlu0 %v491
        %v493 = vpop.xlane.xlu0 %492
        %v494 = vadd.f32 %v427, %v428
        %495 = vadd.xlane.f32.xlu0 %v494
        %v496 = vpop.xlane.xlu0 %495
        %v497 = vadd.f32 %v429, %v430
        %498 = vadd.xlane.f32.xlu0 %v497
        %v499 = vpop.xlane.xlu0 %498
        %v500 = vadd.f32 %v431, %v432
        %501 = vadd.xlane.f32.xlu0 %v500
        %v502 = vpop.xlane.xlu0 %501
        %v503 = vadd.f32 %v433, %v434
        %504 = vadd.xlane.f32.xlu0 %v503
        %v505 = vpop.xlane.xlu0 %504
        %v506 = vadd.f32 %v435, %v436
        %507 = vadd.xlane.f32.xlu0 %v506
        %v508 = vpop.xlane.xlu0 %507
        %v509 = vadd.f32 %v437, %v438
        %510 = vadd.xlane.f32.xlu0 %v509
        %v511 = vpop.xlane.xlu0 %510
        %v512 = vadd.f32 %v439, %v440
        %513 = vadd.xlane.f32.xlu0 %v512
        %v514 = vpop.xlane.xlu0 %513
        %v515 = vadd.f32 %v441, %v442
        %516 = vadd.xlane.f32.xlu0 %v515
        %v517 = vpop.xlane.xlu0 %516
        %v518 = vadd.f32 %v443, %v444
        %519 = vadd.xlane.f32.xlu0 %v518
        %v520 = vpop.xlane.xlu0 %519
        %v521 = vadd.f32 %v445, %v446
        %522 = vadd.xlane.f32.xlu0 %v521
        %v523 = vpop.xlane.xlu0 %522
        %v524 = vadd.f32 %v447, %v448
        %525 = vadd.xlane.f32.xlu0 %v524
        %v526 = vpop.xlane.xlu0 %525
        %v527 = vadd.f32 %v449, %v450
        %528 = vadd.xlane.f32.xlu0 %v527
        %v529 = vpop.xlane.xlu0 %528
        %v530 = vadd.f32 %v451, %v452
        %531 = vadd.xlane.f32.xlu0 %v530
        %v532 = vpop.xlane.xlu0 %531
        %v533 = vadd.f32 %v453, %v454
        %534 = vadd.xlane.f32.xlu0 %v533
        %v535 = vpop.xlane.xlu0 %534
        %v536 = vadd.f32 %v455, %v456
        %537 = vadd.xlane.f32.xlu0 %v536
        %v538 = vpop.xlane.xlu0 %537
        %v539 = vadd.f32 %v457, %v458
        %540 = vadd.xlane.f32.xlu0 %v539
        %v541 = vpop.xlane.xlu0 %540
        %v542 = vadd.f32 %v459, %v460
        %543 = vadd.xlane.f32.xlu0 %v542
        %v544 = vpop.xlane.xlu0 %543
        %v545 = vadd.f32 %v461, %v462
        %546 = vadd.xlane.f32.xlu0 %v545
        %v547 = vpop.xlane.xlu0 %546
        %v548 = vadd.f32 %v463, %v464
        %549 = vadd.xlane.f32.xlu0 %v548
        %v550 = vpop.xlane.xlu0 %549
        %v551 = vadd.f32 %v465, %v466
        %552 = vadd.xlane.f32.xlu0 %v551
        %v553 = vpop.xlane.xlu0 %552
        %v554 = vadd.f32 %v467, %v468
        %555 = vadd.xlane.f32.xlu0 %v554
        %v556 = vpop.xlane.xlu0 %555
        %v557 = vadd.f32 %v469, %v470
        %558 = vadd.xlane.f32.xlu0 %v557
        %v559 = vpop.xlane.xlu0 %558
        %v560 = vadd.f32 %v471, %v472
        %561 = vadd.xlane.f32.xlu0 %v560
        %v562 = vpop.xlane.xlu0 %561
        %v563 = vadd.f32 %v473, %v474
        %564 = vadd.xlane.f32.xlu0 %v563
        %v565 = vpop.xlane.xlu0 %564
        %v566 = vadd.f32 %v475, %v476
        %567 = vadd.xlane.f32.xlu0 %v566
        %v568 = vpop.xlane.xlu0 %567
        %v569 = vadd.f32 %v477, %v478
        %570 = vadd.xlane.f32.xlu0 %v569
        %v571 = vpop.xlane.xlu0 %570
        %v572 = vadd.f32 %v479, %v480
        %573 = vadd.xlane.f32.xlu0 %v572
        %v574 = vpop.xlane.xlu0 %573
        %v575 = vadd.f32 %v481, %v482
        %576 = vadd.xlane.f32.xlu0 %v575
        %v577 = vpop.xlane.xlu0 %576
        %v578 = vadd.f32 %v483, %v484
        %579 = vadd.xlane.f32.xlu0 %v578
        %v580 = vpop.xlane.xlu0 %579
        %v581 = vadd.f32 %v327, %v375
        %v582 = vadd.f32 %v330, %v378
        %v583 = vadd.f32 %v333, %v381
        %v584 = vadd.f32 %v336, %v384
        %v585 = vadd.f32 %v339, %v387
        %v586 = vadd.f32 %v342, %v390
        %v587 = vadd.f32 %v345, %v393
        %v588 = vadd.f32 %v348, %v396
        %v589 = vadd.f32 %v351, %v399
        %v590 = vadd.f32 %v354, %v402
        %v591 = vadd.f32 %v357, %v405
        %v592 = vadd.f32 %v360, %v408
        %v593 = vadd.f32 %v363, %v411
        %v594 = vadd.f32 %v366, %v414
        %v595 = vadd.f32 %v369, %v417
        %v596 = vadd.f32 %v372, %v420
        %v597 = vadd.f32 %v487, %v535
        %v598 = vadd.f32 %v490, %v538
        %v599 = vadd.f32 %v493, %v541
        %v600 = vadd.f32 %v496, %v544
        %v601 = vadd.f32 %v499, %v547
        %v602 = vadd.f32 %v502, %v550
        %v603 = vadd.f32 %v505, %v553
        %v604 = vadd.f32 %v508, %v556
        %v605 = vadd.f32 %v511, %v559
        %v606 = vadd.f32 %v514, %v562
        %v607 = vadd.f32 %v517, %v565
        %v608 = vadd.f32 %v520, %v568
        %v609 = vadd.f32 %v523, %v571
        %v610 = vadd.f32 %v526, %v574
        %v611 = vadd.f32 %v529, %v577
        %v612 = vadd.f32 %v532, %v580
        %v613 = vmul.f32 %v581, 0.001953125
        %v614 = vmul.f32 %v582, 0.001953125
        %v615 = vmul.f32 %v583, 0.001953125
        %v616 = vmul.f32 %v584, 0.001953125
        %v617 = vmul.f32 %v585, 0.001953125
        %v618 = vmul.f32 %v586, 0.001953125
        %v619 = vmul.f32 %v587, 0.001953125
        %v620 = vmul.f32 %v588, 0.001953125
        %v621 = vmul.f32 %v589, 0.001953125
        %v622 = vmul.f32 %v590, 0.001953125
        %v623 = vmul.f32 %v591, 0.001953125
        %v624 = vmul.f32 %v592, 0.001953125
        %v625 = vmul.f32 %v593, 0.001953125
        %v626 = vmul.f32 %v594, 0.001953125
        %v627 = vmul.f32 %v595, 0.001953125
        %v628 = vmul.f32 %v596, 0.001953125
        %v629 = vmul.f32 %v597, 0.001953125
        %v630 = vmul.f32 %v598, 0.001953125
        %v631 = vmul.f32 %v599, 0.001953125
        %v632 = vmul.f32 %v600, 0.001953125
        %v633 = vmul.f32 %v601, 0.001953125
        %v634 = vmul.f32 %v602, 0.001953125
        %v635 = vmul.f32 %v603, 0.001953125
        %v636 = vmul.f32 %v604, 0.001953125
        %v637 = vmul.f32 %v605, 0.001953125
        %v638 = vmul.f32 %v606, 0.001953125
        %v639 = vmul.f32 %v607, 0.001953125
        %v640 = vmul.f32 %v608, 0.001953125
        %v641 = vmul.f32 %v609, 0.001953125
        %v642 = vmul.f32 %v610, 0.001953125
        %v643 = vmul.f32 %v611, 0.001953125
        %v644 = vmul.f32 %v612, 0.001953125
        %v645 = vmul.f32 %v613, %v613
        %v646 = vmul.f32 %v614, %v614
        %v647 = vmul.f32 %v615, %v615
        %v648 = vmul.f32 %v616, %v616
        %v649 = vmul.f32 %v617, %v617
        %v650 = vmul.f32 %v618, %v618
        %v651 = vmul.f32 %v619, %v619
        %v652 = vmul.f32 %v620, %v620
        %v653 = vmul.f32 %v621, %v621
        %v654 = vmul.f32 %v622, %v622
        %v655 = vmul.f32 %v623, %v623
        %v656 = vmul.f32 %v624, %v624
        %v657 = vmul.f32 %v625, %v625
        %v658 = vmul.f32 %v626, %v626
        %v659 = vmul.f32 %v627, %v627
        %v660 = vmul.f32 %v628, %v628
        %v661 = vsub.f32 %v629, %v645
        %v662 = vsub.f32 %v630, %v646
        %v663 = vsub.f32 %v631, %v647
        %v664 = vsub.f32 %v632, %v648
        %v665 = vsub.f32 %v633, %v649
        %v666 = vsub.f32 %v634, %v650
        %v667 = vsub.f32 %v635, %v651
        %v668 = vsub.f32 %v636, %v652
        %v669 = vsub.f32 %v637, %v653
        %v670 = vsub.f32 %v638, %v654
        %v671 = vsub.f32 %v639, %v655
        %v672 = vsub.f32 %v640, %v656
        %v673 = vsub.f32 %v641, %v657
        %v674 = vsub.f32 %v642, %v658
        %v675 = vsub.f32 %v643, %v659
        %v676 = vsub.f32 %v644, %v660
        %v677 = vadd.f32 %v661, 1e-05
        %v678 = vadd.f32 %v662, 1e-05
        %v679 = vadd.f32 %v663, 1e-05
        %v680 = vadd.f32 %v664, 1e-05
        %v681 = vadd.f32 %v665, 1e-05
        %v682 = vadd.f32 %v666, 1e-05
        %v683 = vadd.f32 %v667, 1e-05
        %v684 = vadd.f32 %v668, 1e-05
        %v685 = vadd.f32 %v669, 1e-05
        %v686 = vadd.f32 %v670, 1e-05
        %v687 = vadd.f32 %v671, 1e-05
        %v688 = vadd.f32 %v672, 1e-05
        %v689 = vadd.f32 %v673, 1e-05
        %v690 = vadd.f32 %v674, 1e-05
        %v691 = vadd.f32 %v675, 1e-05
        %v692 = vadd.f32 %v676, 1e-05
        %v693 = vrsqrt.pop %v677
        %v694 = vrsqrt.pop %v678
        %v695 = vrsqrt.pop %v679
        %v696 = vrsqrt.pop %v680
        %v697 = vrsqrt.pop %v681
        %v698 = vrsqrt.pop %v682
        %v699 = vrsqrt.pop %v683
        %v700 = vrsqrt.pop %v684
        %v701 = vrsqrt.pop %v685
        %v702 = vrsqrt.pop %v686
        %v703 = vrsqrt.pop %v687
        %v704 = vrsqrt.pop %v688
        %v705 = vrsqrt.pop %v689
        %v706 = vrsqrt.pop %v690
        %v707 = vrsqrt.pop %v691
        %v708 = vrsqrt.pop %v692
        %v709 = vld [vmem:[%s252] sm:$0xff]
        %v710 = vld [vmem:[%s252 + $0x8] sm:$0xff]
        %v711 = vld [vmem:[%s252 + $0x10] sm:$0xff]
        %v712 = vld [vmem:[%s252 + $0x18] sm:$0xff]
        %v713 = vld [vmem:[%s252 + $0x20] sm:$0xff]
        %v714 = vld [vmem:[%s252 + $0x28] sm:$0xff]
        %v715 = vld [vmem:[%s252 + $0x30] sm:$0xff]
        %v716 = vld [vmem:[%s252 + $0x38] sm:$0xff]
        %v717 = vld [vmem:[%s252 + $0x40] sm:$0xff]
        %v718 = vld [vmem:[%s252 + $0x48] sm:$0xff]
        %v719 = vld [vmem:[%s252 + $0x50] sm:$0xff]
        %v720 = vld [vmem:[%s252 + $0x58] sm:$0xff]
        %v721 = vld [vmem:[%s252 + $0x60] sm:$0xff]
        %v722 = vld [vmem:[%s252 + $0x68] sm:$0xff]
        %v723 = vld [vmem:[%s252 + $0x70] sm:$0xff]
        %v724 = vld [vmem:[%s252 + $0x78] sm:$0xff]
        %v725 = vmul.f32 %v709, %v693
        %v726 = vmul.f32 %v710, %v694
        %v727 = vmul.f32 %v711, %v695
        %v728 = vmul.f32 %v712, %v696
        %v729 = vmul.f32 %v713, %v697
        %v730 = vmul.f32 %v714, %v698
        %v731 = vmul.f32 %v715, %v699
        %v732 = vmul.f32 %v716, %v700
        %v733 = vmul.f32 %v717, %v701
        %v734 = vmul.f32 %v718, %v702
        %v735 = vmul.f32 %v719, %v703
        %v736 = vmul.f32 %v720, %v704
        %v737 = vmul.f32 %v721, %v705
        %v738 = vmul.f32 %v722, %v706
        %v739 = vmul.f32 %v723, %v707
        %v740 = vmul.f32 %v724, %v708
        %v741 = vld [vmem:[%s258] sm:$0xff]
        %v742 = vld [vmem:[%s258 + $0x8] sm:$0xff]
        %v743 = vld [vmem:[%s258 + $0x10] sm:$0xff]
        %v744 = vld [vmem:[%s258 + $0x18] sm:$0xff]
        %v745 = vld [vmem:[%s258 + $0x20] sm:$0xff]
        %v746 = vld [vmem:[%s258 + $0x28] sm:$0xff]
        %v747 = vld [vmem:[%s258 + $0x30] sm:$0xff]
        %v748 = vld [vmem:[%s258 + $0x38] sm:$0xff]
        %v749 = vld [vmem:[%s258 + $0x40] sm:$0xff]
        %v750 = vld [vmem:[%s258 + $0x48] sm:$0xff]
        %v751 = vld [vmem:[%s258 + $0x50] sm:$0xff]
        %v752 = vld [vmem:[%s258 + $0x58] sm:$0xff]
        %v753 = vld [vmem:[%s258 + $0x60] sm:$0xff]
        %v754 = vld [vmem:[%s258 + $0x68] sm:$0xff]
        %v755 = vld [vmem:[%s258 + $0x70] sm:$0xff]
        %v756 = vld [vmem:[%s258 + $0x78] sm:$0xff]
        %v757 = vmul.f32 %v613, %v725
        %v758 = vmul.f32 %v614, %v726
        %v759 = vmul.f32 %v615, %v727
        %v760 = vmul.f32 %v616, %v728
        %v761 = vmul.f32 %v617, %v729
        %v762 = vmul.f32 %v618, %v730
        %v763 = vmul.f32 %v619, %v731
        %v764 = vmul.f32 %v620, %v732
        %v765 = vmul.f32 %v621, %v733
        %v766 = vmul.f32 %v622, %v734
        %v767 = vmul.f32 %v623, %v735
        %v768 = vmul.f32 %v624, %v736
        %v769 = vmul.f32 %v625, %v737
        %v770 = vmul.f32 %v626, %v738
        %v771 = vmul.f32 %v627, %v739
        %v772 = vmul.f32 %v628, %v740
        %v773 = vsub.f32 %v741, %v757
        %v774 = vsub.f32 %v742, %v758
        %v775 = vsub.f32 %v743, %v759
        %v776 = vsub.f32 %v744, %v760
        %v777 = vsub.f32 %v745, %v761
        %v778 = vsub.f32 %v746, %v762
        %v779 = vsub.f32 %v747, %v763
        %v780 = vsub.f32 %v748, %v764
        %v781 = vsub.f32 %v749, %v765
        %v782 = vsub.f32 %v750, %v766
        %v783 = vsub.f32 %v751, %v767
        %v784 = vsub.f32 %v752, %v768
        %v785 = vsub.f32 %v753, %v769
        %v786 = vsub.f32 %v754, %v770
        %v787 = vsub.f32 %v755, %v771
        %v788 = vsub.f32 %v756, %v772
        %790 = vset.pattern.permute.xlu0 0
        %791 = vperm.xlu0 %790, %v725
        %v792 = vpop.permute.xlu0 %791
        %795 = vset.pattern.permute.xlu0 0
        %796 = vperm.xlu0 %795, %v726
        %v797 = vpop.permute.xlu0 %796
        %800 = vset.pattern.permute.xlu0 0
        %801 = vperm.xlu0 %800, %v727
        %v802 = vpop.permute.xlu0 %801
        %805 = vset.pattern.permute.xlu0 0
        %806 = vperm.xlu0 %805, %v728
        %v807 = vpop.permute.xlu0 %806
        %810 = vset.pattern.permute.xlu0 0
        %811 = vperm.xlu0 %810, %v729
        %v812 = vpop.permute.xlu0 %811
        %815 = vset.pattern.permute.xlu0 0
        %816 = vperm.xlu0 %815, %v730
        %v817 = vpop.permute.xlu0 %816
        %820 = vset.pattern.permute.xlu0 0
        %821 = vperm.xlu0 %820, %v731
        %v822 = vpop.permute.xlu0 %821
        %825 = vset.pattern.permute.xlu0 0
        %826 = vperm.xlu0 %825, %v732
        %v827 = vpop.permute.xlu0 %826
        %830 = vset.pattern.permute.xlu0 0
        %831 = vperm.xlu0 %830, %v733
        %v832 = vpop.permute.xlu0 %831
        %835 = vset.pattern.permute.xlu0 0
        %836 = vperm.xlu0 %835, %v734
        %v837 = vpop.permute.xlu0 %836
        %840 = vset.pattern.permute.xlu0 0
        %841 = vperm.xlu0 %840, %v735
        %v842 = vpop.permute.xlu0 %841
        %845 = vset.pattern.permute.xlu0 0
        %846 = vperm.xlu0 %845, %v736
        %v847 = vpop.permute.xlu0 %846
        %850 = vset.pattern.permute.xlu0 0
        %851 = vperm.xlu0 %850, %v737
        %v852 = vpop.permute.xlu0 %851
        %855 = vset.pattern.permute.xlu0 0
        %856 = vperm.xlu0 %855, %v738
        %v857 = vpop.permute.xlu0 %856
        %860 = vset.pattern.permute.xlu0 0
        %861 = vperm.xlu0 %860, %v739
        %v862 = vpop.permute.xlu0 %861
        %865 = vset.pattern.permute.xlu0 0
        %866 = vperm.xlu0 %865, %v740
        %v867 = vpop.permute.xlu0 %866
        %v869 = vmul.f32 %v261, %v792
        %v870 = vmul.f32 %v262, %v792
        %v871 = vmul.f32 %v263, %v797
        %v872 = vmul.f32 %v264, %v797
        %v873 = vmul.f32 %v265, %v802
        %v874 = vmul.f32 %v266, %v802
        %v875 = vmul.f32 %v267, %v807
        %v876 = vmul.f32 %v268, %v807
        %v877 = vmul.f32 %v269, %v812
        %v878 = vmul.f32 %v270, %v812
        %v879 = vmul.f32 %v271, %v817
        %v880 = vmul.f32 %v272, %v817
        %v881 = vmul.f32 %v273, %v822
        %v882 = vmul.f32 %v274, %v822
        %v883 = vmul.f32 %v275, %v827
        %v884 = vmul.f32 %v276, %v827
        %v885 = vmul.f32 %v277, %v832
        %v886 = vmul.f32 %v278, %v832
        %v887 = vmul.f32 %v279, %v837
        %v888 = vmul.f32 %v280, %v837
        %v889 = vmul.f32 %v281, %v842
        %v890 = vmul.f32 %v282, %v842
        %v891 = vmul.f32 %v283, %v847
        %v892 = vmul.f32 %v284, %v847
        %v893 = vmul.f32 %v285, %v852
        %v894 = vmul.f32 %v286, %v852
        %v895 = vmul.f32 %v287, %v857
        %v896 = vmul.f32 %v288, %v857
        %v897 = vmul.f32 %v289, %v862
        %v898 = vmul.f32 %v290, %v862
        %v899 = vmul.f32 %v291, %v867
        %v900 = vmul.f32 %v292, %v867
        %v901 = vmul.f32 %v293, %v792
        %v902 = vmul.f32 %v294, %v792
        %v903 = vmul.f32 %v295, %v797
        %v904 = vmul.f32 %v296, %v797
        %v905 = vmul.f32 %v297, %v802
        %v906 = vmul.f32 %v298, %v802
        %v907 = vmul.f32 %v299, %v807
        %v908 = vmul.f32 %v300, %v807
        %v909 = vmul.f32 %v301, %v812
        %v910 = vmul.f32 %v302, %v812
        %v911 = vmul.f32 %v303, %v817
        %v912 = vmul.f32 %v304, %v817
        %v913 = vmul.f32 %v305, %v822
        %v914 = vmul.f32 %v306, %v822
        %v915 = vmul.f32 %v307, %v827
        %v916 = vmul.f32 %v308, %v827
        %v917 = vmul.f32 %v309, %v832
        %v918 = vmul.f32 %v310, %v832
        %v919 = vmul.f32 %v311, %v837
        %v920 = vmul.f32 %v312, %v837
        %v921 = vmul.f32 %v313, %v842
        %v922 = vmul.f32 %v314, %v842
        %v923 = vmul.f32 %v315, %v847
        %v924 = vmul.f32 %v316, %v847
        %v925 = vmul.f32 %v317, %v852
        %v926 = vmul.f32 %v318, %v852
        %v927 = vmul.f32 %v319, %v857
        %v928 = vmul.f32 %v320, %v857
        %v929 = vmul.f32 %v321, %v862
        %v930 = vmul.f32 %v322, %v862
        %v931 = vmul.f32 %v323, %v867
        %v932 = vmul.f32 %v324, %v867
        %934 = vset.pattern.permute.xlu0 0
        %935 = vperm.xlu0 %934, %v773
        %v936 = vpop.permute.xlu0 %935
        %939 = vset.pattern.permute.xlu0 0
        %940 = vperm.xlu0 %939, %v774
        %v941 = vpop.permute.xlu0 %940
        %944 = vset.pattern.permute.xlu0 0
        %945 = vperm.xlu0 %944, %v775
        %v946 = vpop.permute.xlu0 %945
        %949 = vset.pattern.permute.xlu0 0
        %950 = vperm.xlu0 %949, %v776
        %v951 = vpop.permute.xlu0 %950
        %954 = vset.pattern.permute.xlu0 0
        %955 = vperm.xlu0 %954, %v777
        %v956 = vpop.permute.xlu0 %955
        %959 = vset.pattern.permute.xlu0 0
        %960 = vperm.xlu0 %959, %v778
        %v961 = vpop.permute.xlu0 %960
        %964 = vset.pattern.permute.xlu0 0
        %965 = vperm.xlu0 %964, %v779
        %v966 = vpop.permute.xlu0 %965
        %969 = vset.pattern.permute.xlu0 0
        %970 = vperm.xlu0 %969, %v780
        %v971 = vpop.permute.xlu0 %970
        %974 = vset.pattern.permute.xlu0 0
        %975 = vperm.xlu0 %974, %v781
        %v976 = vpop.permute.xlu0 %975
        %979 = vset.pattern.permute.xlu0 0
        %980 = vperm.xlu0 %979, %v782
        %v981 = vpop.permute.xlu0 %980
        %984 = vset.pattern.permute.xlu0 0
        %985 = vperm.xlu0 %984, %v783
        %v986 = vpop.permute.xlu0 %985
        %989 = vset.pattern.permute.xlu0 0
        %990 = vperm.xlu0 %989, %v784
        %v991 = vpop.permute.xlu0 %990
        %994 = vset.pattern.permute.xlu0 0
        %995 = vperm.xlu0 %994, %v785
        %v996 = vpop.permute.xlu0 %995
        %999 = vset.pattern.permute.xlu0 0
        %1000 = vperm.xlu0 %999, %v786
        %v1001 = vpop.permute.xlu0 %1000
        %1004 = vset.pattern.permute.xlu0 0
        %1005 = vperm.xlu0 %1004, %v787
        %v1006 = vpop.permute.xlu0 %1005
        %1009 = vset.pattern.permute.xlu0 0
        %1010 = vperm.xlu0 %1009, %v788
        %v1011 = vpop.permute.xlu0 %1010
        %v1013 = vadd.f32 %v869, %v936
        %v1014 = vadd.f32 %v870, %v936
        %v1015 = vadd.f32 %v871, %v941
        %v1016 = vadd.f32 %v872, %v941
        %v1017 = vadd.f32 %v873, %v946
        %v1018 = vadd.f32 %v874, %v946
        %v1019 = vadd.f32 %v875, %v951
        %v1020 = vadd.f32 %v876, %v951
        %v1021 = vadd.f32 %v877, %v956
        %v1022 = vadd.f32 %v878, %v956
        %v1023 = vadd.f32 %v879, %v961
        %v1024 = vadd.f32 %v880, %v961
        %v1025 = vadd.f32 %v881, %v966
        %v1026 = vadd.f32 %v882, %v966
        %v1027 = vadd.f32 %v883, %v971
        %v1028 = vadd.f32 %v884, %v971
        %v1029 = vadd.f32 %v885, %v976
        %v1030 = vadd.f32 %v886, %v976
        %v1031 = vadd.f32 %v887, %v981
        %v1032 = vadd.f32 %v888, %v981
        %v1033 = vadd.f32 %v889, %v986
        %v1034 = vadd.f32 %v890, %v986
        %v1035 = vadd.f32 %v891, %v991
        %v1036 = vadd.f32 %v892, %v991
        %v1037 = vadd.f32 %v893, %v996
        %v1038 = vadd.f32 %v894, %v996
        %v1039 = vadd.f32 %v895, %v1001
        %v1040 = vadd.f32 %v896, %v1001
        %v1041 = vadd.f32 %v897, %v1006
        %v1042 = vadd.f32 %v898, %v1006
        %v1043 = vadd.f32 %v899, %v1011
        %v1044 = vadd.f32 %v900, %v1011
        %v1045 = vadd.f32 %v901, %v936
        %v1046 = vadd.f32 %v902, %v936
        %v1047 = vadd.f32 %v903, %v941
        %v1048 = vadd.f32 %v904, %v941
        %v1049 = vadd.f32 %v905, %v946
        %v1050 = vadd.f32 %v906, %v946
        %v1051 = vadd.f32 %v907, %v951
        %v1052 = vadd.f32 %v908, %v951
        %v1053 = vadd.f32 %v909, %v956
        %v1054 = vadd.f32 %v910, %v956
        %v1055 = vadd.f32 %v911, %v961
        %v1056 = vadd.f32 %v912, %v961
        %v1057 = vadd.f32 %v913, %v966
        %v1058 = vadd.f32 %v914, %v966
        %v1059 = vadd.f32 %v915, %v971
        %v1060 = vadd.f32 %v916, %v971
        %v1061 = vadd.f32 %v917, %v976
        %v1062 = vadd.f32 %v918, %v976
        %v1063 = vadd.f32 %v919, %v981
        %v1064 = vadd.f32 %v920, %v981
        %v1065 = vadd.f32 %v921, %v986
        %v1066 = vadd.f32 %v922, %v986
        %v1067 = vadd.f32 %v923, %v991
        %v1068 = vadd.f32 %v924, %v991
        %v1069 = vadd.f32 %v925, %v996
        %v1070 = vadd.f32 %v926, %v996
        %v1071 = vadd.f32 %v927, %v1001
        %v1072 = vadd.f32 %v928, %v1001
        %v1073 = vadd.f32 %v929, %v1006
        %v1074 = vadd.f32 %v930, %v1006
        %v1075 = vadd.f32 %v931, %v1011
        %v1076 = vadd.f32 %v932, %v1011
        %1077 = vst [vmem:[%s246] sm:$0xff] %v1013
        %1078 = vst [vmem:[%s246 + $0x8] sm:$0xff] %v1014
        %1079 = vst [vmem:[%s246 + $0x10] sm:$0xff] %v1015
        %1080 = vst [vmem:[%s246 + $0x18] sm:$0xff] %v1016
        %1081 = vst [vmem:[%s246 + $0x20] sm:$0xff] %v1017
        %1082 = vst [vmem:[%s246 + $0x28] sm:$0xff] %v1018
        %1083 = vst [vmem:[%s246 + $0x30] sm:$0xff] %v1019
        %1084 = vst [vmem:[%s246 + $0x38] sm:$0xff] %v1020
        %1085 = vst [vmem:[%s246 + $0x40] sm:$0xff] %v1021
        %1086 = vst [vmem:[%s246 + $0x48] sm:$0xff] %v1022
        %1087 = vst [vmem:[%s246 + $0x50] sm:$0xff] %v1023
        %1088 = vst [vmem:[%s246 + $0x58] sm:$0xff] %v1024
        %1089 = vst [vmem:[%s246 + $0x60] sm:$0xff] %v1025
        %1090 = vst [vmem:[%s246 + $0x68] sm:$0xff] %v1026
        %1091 = vst [vmem:[%s246 + $0x70] sm:$0xff] %v1027
        %1092 = vst [vmem:[%s246 + $0x78] sm:$0xff] %v1028
        %1093 = vst [vmem:[%s246 + $0x80] sm:$0xff] %v1029
        %1094 = vst [vmem:[%s246 + $0x88] sm:$0xff] %v1030
        %1095 = vst [vmem:[%s246 + $0x90] sm:$0xff] %v1031
        %1096 = vst [vmem:[%s246 + $0x98] sm:$0xff] %v1032
        %1097 = vst [vmem:[%s246 + $0xa0] sm:$0xff] %v1033
        %1098 = vst [vmem:[%s246 + $0xa8] sm:$0xff] %v1034
        %1099 = vst [vmem:[%s246 + $0xb0] sm:$0xff] %v1035
        %1100 = vst [vmem:[%s246 + $0xb8] sm:$0xff] %v1036
        %1101 = vst [vmem:[%s246 + $0xc0] sm:$0xff] %v1037
        %1102 = vst [vmem:[%s246 + $0xc8] sm:$0xff] %v1038
        %1103 = vst [vmem:[%s246 + $0xd0] sm:$0xff] %v1039
        %1104 = vst [vmem:[%s246 + $0xd8] sm:$0xff] %v1040
        %1105 = vst [vmem:[%s246 + $0xe0] sm:$0xff] %v1041
        %1106 = vst [vmem:[%s246 + $0xe8] sm:$0xff] %v1042
        %1107 = vst [vmem:[%s246 + $0xf0] sm:$0xff] %v1043
        %1108 = vst [vmem:[%s246 + $0xf8] sm:$0xff] %v1044
        %1109 = vst [vmem:[%s246 + $0x100] sm:$0xff] %v1045
        %1110 = vst [vmem:[%s246 + $0x108] sm:$0xff] %v1046
        %1111 = vst [vmem:[%s246 + $0x110] sm:$0xff] %v1047
        %1112 = vst [vmem:[%s246 + $0x118] sm:$0xff] %v1048
        %1113 = vst [vmem:[%s246 + $0x120] sm:$0xff] %v1049
        %1114 = vst [vmem:[%s246 + $0x128] sm:$0xff] %v1050
        %1115 = vst [vmem:[%s246 + $0x130] sm:$0xff] %v1051
        %1116 = vst [vmem:[%s246 + $0x138] sm:$0xff] %v1052
        %1117 = vst [vmem:[%s246 + $0x140] sm:$0xff] %v1053
        %1118 = vst [vmem:[%s246 + $0x148] sm:$0xff] %v1054
        %1119 = vst [vmem:[%s246 + $0x150] sm:$0xff] %v1055
        %1120 = vst [vmem:[%s246 + $0x158] sm:$0xff] %v1056
        %1121 = vst [vmem:[%s246 + $0x160] sm:$0xff] %v1057
        %1122 = vst [vmem:[%s246 + $0x168] sm:$0xff] %v1058
        %1123 = vst [vmem:[%s246 + $0x170] sm:$0xff] %v1059
        %1124 = vst [vmem:[%s246 + $0x178] sm:$0xff] %v1060
        %1125 = vst [vmem:[%s246 + $0x180] sm:$0xff] %v1061
        %1126 = vst [vmem:[%s246 + $0x188] sm:$0xff] %v1062
        %1127 = vst [vmem:[%s246 + $0x190] sm:$0xff] %v1063
        %1128 = vst [vmem:[%s246 + $0x198] sm:$0xff] %v1064
        %1129 = vst [vmem:[%s246 + $0x1a0] sm:$0xff] %v1065
        %1130 = vst [vmem:[%s246 + $0x1a8] sm:$0xff] %v1066
        %1131 = vst [vmem:[%s246 + $0x1b0] sm:$0xff] %v1067
        %1132 = vst [vmem:[%s246 + $0x1b8] sm:$0xff] %v1068
        %1133 = vst [vmem:[%s246 + $0x1c0] sm:$0xff] %v1069
        %1134 = vst [vmem:[%s246 + $0x1c8] sm:$0xff] %v1070
        %1135 = vst [vmem:[%s246 + $0x1d0] sm:$0xff] %v1071
        %1136 = vst [vmem:[%s246 + $0x1d8] sm:$0xff] %v1072
        %1137 = vst [vmem:[%s246 + $0x1e0] sm:$0xff] %v1073
        %1138 = vst [vmem:[%s246 + $0x1e8] sm:$0xff] %v1074
        %1139 = vst [vmem:[%s246 + $0x1f0] sm:$0xff] %v1075
        %1140 = vst [vmem:[%s246 + $0x1f8] sm:$0xff] %v1076
        %s1141 = sand.u32 %s106, 1
        %s1142 = scalar_lea.sflag [#allocation4], %s1141
        %s1143 = sand.u32 %s106, 1
        %s1144 = smul.addr %s1143, 512
        %s1145 = scalar_lea.vmem [#allocation5], %s1144
        // Predicated region
        $region37: #{tpu_custom_call.1} parent=31 // pred_check
          %p1146 = pneg %p116
        $region38: #{tpu_custom_call.1} parent=31 // pred_check_branch
          %1148 = sbr.rel (%p1146) target = $region40
        $region39: #{tpu_custom_call.1} parent=31 // pred_region
          #allocation9 [shape = 'u32[6]{0}', space=smem, size = 0x18, scoped, tag = 'DMA stride descriptor']
          %s1149 = smul.u32 16, %s20
          %s1151 = ssub.s32 8192, 8192
          %1152 = vsyncadd %s1142, %s1151
          %s1153 = smul.addr %s1149, 2
          %s1154 = smul.addr %s1153, 128
          %s1155 = scalar_lea.hbm %s3, %s1154
          %s1157 = sshll.u32 1, 14
          %s1158 = sxor.u32 4294967295, %s1157
          %s1161 = sshll.u32 7, 18
          %s1162 = sxor.u32 4294967295, %s1161
          %s1163 = sand.u32 0, %s1162
          %s1165 = sor.u32 %s1163, 0
          %s1166 = sshll.u32 %s1145, 4
          %s1167 = int_to_ptr.vmem [resolvable:$true] %s1166
          %1173 = sst [smem:[#allocation9]] 4096
          %s1174 = scalar_lea.smem [#allocation9], 1
          %1175 = sst [smem:[%s1174]] 8192
          %s1176 = scalar_lea.smem [#allocation9], 2
          %1177 = sst [smem:[%s1176]] 16
          %s1178 = scalar_lea.smem [#allocation9], 3
          %1179 = sst [smem:[%s1178]] 256
          %s1180 = scalar_lea.smem [#allocation9], 4
          %1181 = sst [smem:[%s1180]] 256
          %s1182 = scalar_lea.smem [#allocation9], 5
          %1183 = sst [smem:[%s1182]] 16
          %1185 = dma.general %s1167, 8192, %s1155, %s1142, 131072, [#allocation9], %s1165, 0
        $region40: #{tpu_custom_call.1} parent=31 // pred_fallthru
          _
      $region32: #{tpu_custom_call.1} parent=5 // pred_fallthru
        _
      %p1186 = scmp.le.s32.totalorder 2, %s15
      // Predicated region
      $region41: #{tpu_custom_call.1} parent=5 // pred_check
        %p1187 = pneg %p1186
      $region42: #{tpu_custom_call.1} parent=5 // pred_check_branch
        %1189 = sbr.rel (%p1187) target = $region44
      $region43: #{tpu_custom_call.1} parent=5 // pred_region
        %s1190 = ssub.s32 %s15, 2
        // Predicated region
        $region45: #{tpu_custom_call.1} parent=43 // pred_check
          %p1191 = pneg %p122
        $region46: #{tpu_custom_call.1} parent=43 // pred_check_branch
          %1193 = sbr.rel (%p1191) target = $region48
        $region47: #{tpu_custom_call.1} parent=43 // pred_region
          %s1194 = sand.u32 %s107, 1
          %s1195 = scalar_lea.sflag [#allocation4], %s1194
          %s1196 = sand.u32 %s107, 1
          %s1197 = smul.addr %s1196, 512
          %s1198 = scalar_lea.vmem [#allocation5], %s1197
          %1199 = dma.done %s1195, 8192
        $region48: #{tpu_custom_call.1} parent=43 // pred_fallthru
          _
      $region44: #{tpu_custom_call.1} parent=5 // pred_fallthru
        _
    $region6: #{tpu_custom_call.1} parent=1 // loop_footer
      %s19 = sadd.s32 1, %s15
    $region7: #{tpu_custom_call.1} parent=1 // loop_footer_branch
      %14 = sbr.rel target = $region3
    $region8: #{tpu_custom_call.1} parent=1 // loop_exit
      _
    %1200 = vsyncpa [#allocation3], 1
    %s1201 = scalar_lea.sflag [#allocation3], 1
    %1202 = vsyncpa %s1201, 1
    %1203 = vsyncpa [#allocation4], 1
    %s1204 = scalar_lea.sflag [#allocation4], 1
    %1205 = vsyncpa %s1204, 1

</llo_original>
